<compile_context>
chip_gen: v6e
topology: v6e:2x2x1
jax: 0.10.0
libtpu: 0.0.40
codegen_flags: <defaults>
</compile_context>

<pallas_src>
import jax
import jax.numpy as jnp
from jax.experimental import pallas as pl
from jax.experimental.pallas import tpu as pltpu


def _awl_kernel(l_ref, p_ref, out_ref):
    # l_ref, p_ref: (1, num) f32 tiles in VMEM; out_ref: (1, 1) f32 in SMEM.
    l = l_ref[...]                       # single vld of the losses tile
    p = p_ref[...]                       # single vld of the params tile
    p2 = p * p
    # 1/p^2 * loss + log(1 + p^2); reciprocal (exact) + log1p both use the EUP.
    terms = l * pl.reciprocal(p2) + jnp.log1p(p2)
    out_ref[0, 0] = jnp.sum(terms)       # scalar store straight to SMEM


@jax.jit
def automatic_weighted_loss(losses, params):
    """losses: (num,) f32 per-task loss scalars, params: (num,) f32 -> scalar f32."""
    num = losses.shape[0]
    l2d = losses.reshape(1, num)         # metadata-only reshape (free inside jit)
    p2d = params.reshape(1, num)

    out = pl.pallas_call(
        _awl_kernel,
        out_shape=jax.ShapeDtypeStruct((1, 1), jnp.float32),
        in_specs=[
            pl.BlockSpec((1, num), lambda: (0, 0)),
            pl.BlockSpec((1, num), lambda: (0, 0)),
        ],
        out_specs=pl.BlockSpec(memory_space=pltpu.MemorySpace.SMEM),
        cost_estimate=pl.CostEstimate(
            flops=4 * num,               # mul, recip, mul, add (+ tiny reduce)
            transcendentals=num,         # log1p per task
            bytes_accessed=8 * num + 4,  # two f32 vectors in, one f32 scalar out
        ),
    )(l2d, p2d)
    return out.reshape(())               # 0-d scalar, still inside jit


if __name__ == "__main__":
    num = 2  # matches AutomaticWeightedLoss(num=2)

    # Parameter init mirroring torch.ones(num, requires_grad=True)
    params = jnp.ones((num,), dtype=jnp.float32)

    # Deterministic example "losses" (one scalar per task), e.g. loss1, loss2
    key = jax.random.PRNGKey(0)
    losses = jax.random.uniform(key, (num,), dtype=jnp.float32, minval=0.5, maxval=3.0)

    result = automatic_weighted_loss(losses, params)
    result = jax.block_until_ready(result)

    # Reference (plain JAX) check of the same math as the provided PyTorch module
    p_sq = params ** 2
    ref = jnp.sum(1.0 / p_sq * losses + jnp.log(1.0 + p_sq))
    assert jnp.allclose(result, ref, rtol=1e-5, atol=1e-5), (result, ref)

    print("KERNEL_OK")
</pallas_src>

<mosaic_0001>
module attributes {stable_mosaic.version = 11 : i64} {
  func.func @_awl_kernel(%arg0: memref<1x2xf32, #tpu.memory_space<vmem>>, %arg1: memref<1x2xf32, #tpu.memory_space<vmem>>, %arg2: memref<1x1xf32, #tpu.memory_space<smem>>) attributes {dimension_semantics = [], scalar_prefetch = 0 : i64, scratch_operands = 0 : i64, tpu.core_type = #tpu.core_type<tc>} {
    %c0 = arith.constant 0 : index
    %c0_0 = arith.constant 0 : index
    %0 = vector.load %arg0[%c0, %c0_0] : memref<1x2xf32, #tpu.memory_space<vmem>>, vector<1x2xf32>
    %c0_1 = arith.constant 0 : index
    %c0_2 = arith.constant 0 : index
    %1 = vector.load %arg1[%c0_1, %c0_2] : memref<1x2xf32, #tpu.memory_space<vmem>>, vector<1x2xf32>
    %2 = arith.mulf %1, %1 : vector<1x2xf32>
    %3 = tpu.reciprocal %2 : vector<1x2xf32> -> vector<1x2xf32>
    %4 = arith.mulf %0, %3 : vector<1x2xf32>
    %5 = math.log1p %2 : vector<1x2xf32>
    %6 = arith.addf %4, %5 : vector<1x2xf32>
    %7 = vector.shape_cast %6 : vector<1x2xf32> to vector<1x1x2xf32>
    %cst = arith.constant dense<0.000000e+00> : vector<1xf32>
    %8 = vector.multi_reduction <add>, %7, %cst [1, 2] : vector<1x1x2xf32> to vector<1xf32>
    %9 = vector.shape_cast %8 : vector<1xf32> to vector<1x1x1xf32>
    %10 = vector.extract %9[0, 0, 0] : f32 from vector<1x1x1xf32>
    %c0_3 = arith.constant 0 : index
    %c0_4 = arith.constant 0 : index
    %11 = memref.load %arg2[%c0_3, %c0_4] : memref<1x1xf32, #tpu.memory_space<smem>>
    memref.store %10, %arg2[%c0_3, %c0_4] : memref<1x1xf32, #tpu.memory_space<smem>>
    return
  }
}

</mosaic_0001>

<llo_original>
// kernel: automatic_weighted_loss.1
$region0: #{automatic_weighted_loss.1}
  #allocation0 [shape = 'u32[]', space=smem, size = 0x4, offset = 0x4, fixed_abs, tag = 'smem constant byte address 0x4 - core index']
  #allocation1 [shape = 'u32[144,128]{1,0:T(1,128)}', space=vmem, size = 0x12000, scoped, tag = 'internal scratch']
  %s0 = inlined_call_operand.vmem [shape: f32[1,2], index: 0, kind: input, shape index: {}]
  %s1 = inlined_call_operand.vmem [shape: f32[1,2], index: 1, kind: input, shape index: {}]
  %s2 = inlined_call_operand.hbm [shape: f32[1,1], index: 2, kind: output, shape index: {}]
  %s3 = sld [smem:[#allocation0]]
  $region18: #{automatic_weighted_loss.1} parent=0
    _
  %s5 = ssub.s32 1, %s3
  %s6 = scalar_select 0, %s5, %s3
  $region1: #{automatic_weighted_loss.1} parent=0
    #allocation2 [shape = 'u8[512]{0}', space=smem, size = 0x200, scoped, tag = 'output window, operand 0, single buffered']
    #allocation3 [shape = 's32[1]{0}', space=sflag, size = 0x4, scoped, tag = 'scoped memory for automatic_weighted_loss.1']
    %7 = vsyncpa [#allocation3], 0
    // Predicated region
    $region2: #{automatic_weighted_loss.1} parent=1 // pred_check
      _
    $region3: #{automatic_weighted_loss.1} parent=1 // pred_check_branch
      %9 = sbr.rel (0) target = $region5
    $region4: #{automatic_weighted_loss.1} parent=1 // pred_region
      _
    $region5: #{automatic_weighted_loss.1} parent=1 // pred_fallthru
      _
    // Predicated region
    $region6: #{automatic_weighted_loss.1} parent=1 // pred_check
      _
    $region7: #{automatic_weighted_loss.1} parent=1 // pred_check_branch
      %11 = sbr.rel (0) target = $region9
    $region8: #{automatic_weighted_loss.1} parent=1 // pred_region
      _
    $region9: #{automatic_weighted_loss.1} parent=1 // pred_fallthru
      _
    %v12 = vld [vmem:[%s0] sm:$0x1]
    %v13 = vld [vmem:[%s1] sm:$0x1]
    %v14 = vmul.f32 %v13, %v13
    %v15 = vrcp.pop %v14
    %v16 = vmul.f32 %v12, %v15
    %v17 = vadd.f32 %v14, 1.0
    %v18 = vlog2.pop %v17
    %v19 = vmul.f32 %v18, 0.6931472
    %v20 = vmul.f32 -0.5, %v14
    %v21 = vadd.f32 %v20, 1.0
    %v22 = vmul.f32 %v21, %v14
    %v23 = vand.u32 2147483647, %v14
    %vm24 = vcmp.lt.f32.partialorder %v23, 0.0004427343
    %v25 = vsel %vm24, %v22, %v19
    %v26 = vadd.f32 %v16, %v25
    %vm27 = vcmask 8192
    %v28 = vsel %vm27, %v26, 0.0
    %29 = vadd.xlane.f32.xlu0 %v28
    %v30 = vpop.xlane.xlu0 %29
    %v31 = vrot.slane %v30, 4
    %v32 = vadd.f32 %v30, %v31
    %v33 = vrot.slane %v32, 2
    %v34 = vadd.f32 %v32, %v33
    %v35 = vrot.slane %v34, 1
    %v36 = vadd.f32 %v34, %v35
    %s37 = vtos %v36
    %s38 = scalar_lea.smem [#allocation2], 0
    %39 = sst [smem:[%s38]] %s37
    // Predicated region
    $region10: #{automatic_weighted_loss.1} parent=1 // pred_check
      _
    $region11: #{automatic_weighted_loss.1} parent=1 // pred_check_branch
      %41 = sbr.rel (0) target = $region13
    $region12: #{automatic_weighted_loss.1} parent=1 // pred_region
      %s43 = ssub.s32 16, 16
      %44 = vsyncadd [#allocation3], %s43
      %47 = dma.smem_to_hbm [#allocation2], 16, %s2, [#allocation3]
    $region13: #{automatic_weighted_loss.1} parent=1 // pred_fallthru
      _
    // Predicated region
    $region14: #{automatic_weighted_loss.1} parent=1 // pred_check
      _
    $region15: #{automatic_weighted_loss.1} parent=1 // pred_check_branch
      %49 = sbr.rel (0) target = $region17
    $region16: #{automatic_weighted_loss.1} parent=1 // pred_region
      %50 = dma.done [#allocation3], 16
    $region17: #{automatic_weighted_loss.1} parent=1 // pred_fallthru
      _
    %51 = sfence
    %52 = vsyncpa [#allocation3], 1

</llo_original>
